<compile_context>
chip_gen: v5e
topology: v5e:2x2
jax: 0.10.0
libtpu: 0.0.40
codegen_flags: <defaults>
</compile_context>

<pallas_src>
import functools

import jax
import jax.numpy as jnp
from jax import lax
from jax.experimental import pallas as pl
from jax.experimental.pallas import tpu as pltpu

_LANES = 128
_SUBLANES = 8
_SINGLE_BLOCK_MAX_ROWS = 1024            # <= 0.5 MiB f32/input -> one un-tiled block
_VMEM_LIMIT_BYTES = 48 * 1024 * 1024     # safe on v5e/v6e (128 MiB) and v7x (64 MiB)


def _mse_single_block_kernel(l_ref, t_ref, out_ref):
    """Whole-array block: squared-error sum reduced to a (1, 128) lane slab."""
    x = l_ref[...].astype(jnp.float32)
    t = t_ref[...].astype(jnp.float32)
    d = x - t
    out_ref[...] = jnp.sum(d * d, axis=0, keepdims=True)


def _mse_chunked_kernel(l_ref, t_ref, out_ref, *, tile_rows, chunk_rows, tail_rows):
    """Per-tile partial sum of squared errors into an (8, 128) f32 slab.

    Streams the (tile_rows, 128) block through the VPU in (chunk_rows, 128)
    slices, accumulating into one vreg-shaped (8, 128) accumulator so no
    tile-sized f32 temporaries are ever live in VMEM.  Only the last grid
    step (partial block) takes the row-masked path.
    """
    n_chunks = tile_rows // chunk_rows
    acc0 = jnp.zeros((_SUBLANES, _LANES), jnp.float32)

    def chunk_sq_sum(r0):
        x = l_ref[pl.ds(r0, chunk_rows), :].astype(jnp.float32)
        t = t_ref[pl.ds(r0, chunk_rows), :].astype(jnp.float32)
        d = x - t
        sq = d * d
        return jnp.sum(sq.reshape(chunk_rows // _SUBLANES, _SUBLANES, _LANES), axis=0)

    def full_body(c, acc):
        r0 = pl.multiple_of(c * chunk_rows, chunk_rows)
        return acc + chunk_sq_sum(r0)

    def full_sum():
        return lax.fori_loop(0, n_chunks, full_body, acc0, unroll=min(n_chunks, 4))

    if tail_rows == tile_rows:
        # No partial block anywhere -> single fast path, no masking at all.
        out_ref[...] = full_sum()
        return

    is_tail = pl.program_id(0) == pl.num_programs(0) - 1

    @pl.when(jnp.logical_not(is_tail))
    def _():
        out_ref[...] = full_sum()

    @pl.when(is_tail)
    def _():
        # tail_rows is a Python int (static): valid rows of the last block.
        n_full = tail_rows // chunk_rows
        rem = tail_rows - n_full * chunk_rows
        acc = acc0
        if n_full:
            acc = lax.fori_loop(0, n_full, full_body, acc, unroll=min(n_full, 4))
        if rem:
            r0 = n_full * chunk_rows                     # static offset
            x = l_ref[pl.ds(r0, chunk_rows), :].astype(jnp.float32)
            t = t_ref[pl.ds(r0, chunk_rows), :].astype(jnp.float32)
            d = x - t
            sq = d * d
            # Mask rows beyond the valid data (garbage from the partial DMA).
            row_ids = lax.broadcasted_iota(jnp.int32, (chunk_rows, _LANES), 0)
            sq = jnp.where(row_ids < rem, sq, 0.0)
            acc = acc + jnp.sum(
                sq.reshape(chunk_rows // _SUBLANES, _SUBLANES, _LANES), axis=0)
        out_ref[...] = acc


def mean_square_err_loss(logit, target, *, tile_rows=8192, chunk_rows=256):
    """Pallas TPU MeanSquareErrLoss.forward: mean((logit.view(-1) - target.float())**2).

    Inputs are kept in their native dtype in HBM (the f32 cast happens inside
    the kernel) -- do NOT pre-cast bf16/f16 inputs in the wrapper.
    Returns a float32 scalar.
    """
    l_flat = jnp.reshape(logit, (-1,))
    t_flat = jnp.reshape(target, (-1,))
    assert l_flat.shape == t_flat.shape, (
        "logit and target must have the same number of elements "
        "(nn.MSELoss broadcasting is not supported)")
    n = l_flat.shape[0]
    assert n > 0, "empty inputs not supported"

    # Lane-dense layout: (rows, 128).  Only the sub-128 remainder ever gets padded.
    rows = pl.cdiv(n, _LANES)
    lane_pad = rows * _LANES - n
    if lane_pad:
        # TODO(synk): this <128-element pad still costs one HBM copy of each input
        # when numel % 128 != 0; all block-level padding is replaced by in-kernel
        # masking (zero pads contribute (0-0)^2 = 0, so the mean over n is exact).
        l_flat = jnp.pad(l_flat, (0, lane_pad))
        t_flat = jnp.pad(t_flat, (0, lane_pad))
    l2d = l_flat.reshape(rows, _LANES)
    t2d = t_flat.reshape(rows, _LANES)

    in_itemsize = jnp.dtype(l2d.dtype).itemsize + jnp.dtype(t2d.dtype).itemsize
    cost = pl.CostEstimate(
        flops=3 * n, transcendentals=0,
        bytes_accessed=rows * _LANES * in_itemsize)

    # dtype-safe chunk rounding (32 covers f32/bf16/int8 minimum sublane tiles).
    chunk_rows = min(max(32, (int(chunk_rows) // 32) * 32), 2048)

    # Small inputs: one un-tiled block.  block_shape == full array dims is always
    # legal, even when rows is not a multiple of 8.
    if rows <= max(_SINGLE_BLOCK_MAX_ROWS, chunk_rows):
        partials = pl.pallas_call(
            _mse_single_block_kernel,
            out_shape=jax.ShapeDtypeStruct((1, _LANES), jnp.float32),
            cost_estimate=cost,
        )(l2d, t2d)
        return jnp.sum(partials) / jnp.float32(n)

    # Large inputs: 1-D grid over big row tiles, one (8, 128) partial per tile.
    tile_rows = max(chunk_rows, (int(tile_rows) // chunk_rows) * chunk_rows)
    tile_rows = min(tile_rows, (rows // chunk_rows) * chunk_rows)  # block <= array rows
    num_tiles = pl.cdiv(rows, tile_rows)
    tail_rows = rows - (num_tiles - 1) * tile_rows                 # in [1, tile_rows]

    kernel = functools.partial(
        _mse_chunked_kernel,
        tile_rows=tile_rows, chunk_rows=chunk_rows, tail_rows=tail_rows)

    partials = pl.pallas_call(
        kernel,
        out_shape=jax.ShapeDtypeStruct((num_tiles, _SUBLANES, _LANES), jnp.float32),
        grid_spec=pltpu.PrefetchScalarGridSpec(
            num_scalar_prefetch=0,
            grid=(num_tiles,),
            in_specs=[
                pl.BlockSpec((tile_rows, _LANES), lambda i: (i, 0)),
                pl.BlockSpec((tile_rows, _LANES), lambda i: (i, 0)),
            ],
            out_specs=pl.BlockSpec((None, _SUBLANES, _LANES), lambda i: (i, 0, 0)),
        ),
        compiler_params=pltpu.CompilerParams(
            # Independent per-tile partial sums -> megacore-shardable.
            dimension_semantics=("parallel",),
            vmem_limit_bytes=_VMEM_LIMIT_BYTES,
        ),
        cost_estimate=cost,
    )(l2d, t2d)

    # Tiny final reduce + mean over the TRUE element count in plain JAX.
    return jnp.sum(partials) / jnp.float32(n)


def _reference(logit, target):
    """Pure-JAX reference mirroring the PyTorch forward."""
    l = jnp.reshape(logit, (-1,)).astype(jnp.float32)
    t = jnp.reshape(target, (-1,)).astype(jnp.float32)
    return jnp.mean((l - t) ** 2)


if __name__ == "__main__":
    key = jax.random.PRNGKey(0)
    k1, k2, k3, k4, k5, k6, k7, k8 = jax.random.split(key, 8)

    # Primary example: small shape consistent with a generic regression loss.
    shape = (2, 4, 16, 16)
    logit = jax.random.normal(k1, shape, dtype=jnp.float32)
    target = jax.random.normal(k2, shape, dtype=jnp.float32)
    out = jax.block_until_ready(mean_square_err_loss(logit, target))
    ref = _reference(logit, target)
    assert jnp.allclose(out, ref, rtol=1e-5, atol=1e-6), (out, ref)

    # numel not a multiple of 128 (lane-remainder path), odd row count.
    l2 = jax.random.normal(k3, (3, 7, 37), dtype=jnp.float32)
    t2 = jax.random.normal(k4, (3, 7, 37), dtype=jnp.float32)
    out2 = jax.block_until_ready(mean_square_err_loss(l2, t2))
    assert jnp.allclose(out2, _reference(l2, t2), rtol=1e-5, atol=1e-6), out2

    # Chunked grid path with a masked partial tail block (bf16 logits kept native).
    l3 = jax.random.normal(k5, (2, 520, 130), dtype=jnp.bfloat16)
    t3 = jax.random.normal(k6, (2, 520, 130), dtype=jnp.float32)
    out3 = jax.block_until_ready(mean_square_err_loss(l3, t3))
    assert jnp.allclose(out3, _reference(l3, t3), rtol=1e-4, atol=1e-5), out3

    # Chunked grid path, exact block multiple (fast path, no masking anywhere).
    l4 = jax.random.normal(k7, (2048, 128), dtype=jnp.float32)
    t4 = jax.random.normal(k8, (2048, 128), dtype=jnp.float32)
    out4 = jax.block_until_ready(
        mean_square_err_loss(l4, t4, tile_rows=256, chunk_rows=64))
    assert jnp.allclose(out4, _reference(l4, t4), rtol=1e-4, atol=1e-5), out4

    print("KERNEL_OK")
</pallas_src>

<mosaic_0001>
module attributes {stable_mosaic.version = 11 : i64} {
  func.func @_mse_single_block_kernel(%arg0: memref<16x128xf32, #tpu.memory_space<vmem>>, %arg1: memref<16x128xf32, #tpu.memory_space<vmem>>, %arg2: memref<1x128xf32, #tpu.memory_space<vmem>>) attributes {dimension_semantics = [], scalar_prefetch = 0 : i64, scratch_operands = 0 : i64, tpu.core_type = #tpu.core_type<tc>} {
    %c0 = arith.constant 0 : index
    %c0_0 = arith.constant 0 : index
    %0 = vector.load %arg0[%c0, %c0_0] : memref<16x128xf32, #tpu.memory_space<vmem>>, vector<16x128xf32>
    %c0_1 = arith.constant 0 : index
    %c0_2 = arith.constant 0 : index
    %1 = vector.load %arg1[%c0_1, %c0_2] : memref<16x128xf32, #tpu.memory_space<vmem>>, vector<16x128xf32>
    %2 = arith.subf %0, %1 : vector<16x128xf32>
    %3 = arith.mulf %2, %2 : vector<16x128xf32>
    %cst = arith.constant dense<0.000000e+00> : vector<128xf32>
    %4 = vector.multi_reduction <add>, %3, %cst [0] : vector<16x128xf32> to vector<128xf32>
    %5 = vector.shape_cast %4 : vector<128xf32> to vector<1x128xf32>
    %c0_3 = arith.constant 0 : index
    %c0_4 = arith.constant 0 : index
    %6 = vector.load %arg2[%c0_3, %c0_4] : memref<1x128xf32, #tpu.memory_space<vmem>>, vector<1x128xf32>
    tpu.vector_store %arg2[%c0_3, %c0_4], %5 {strides = array<i32>} : memref<1x128xf32, #tpu.memory_space<vmem>>, vector<1x128xf32>,
    return
  }
}

</mosaic_0001>

<llo_original>
// kernel: tpu_custom_call.1
$region0: #{tpu_custom_call.1}
  #allocation0 [shape = 'u32[]', space=smem, size = 0x4, offset = 0x4, fixed_abs, tag = 'smem constant byte address 0x4 - core index']
  #allocation1 [shape = 'u32[72,128]{1,0:T(1,128)}', space=vmem, size = 0x9000, scoped, tag = 'internal scratch']
  %s0 = inlined_call_operand.hbm [shape: f32[16,128], index: 0, kind: input, shape index: {}]
  %s1 = inlined_call_operand.hbm [shape: f32[16,128], index: 1, kind: input, shape index: {}]
  %s2 = inlined_call_operand.hbm [shape: f32[1,128], index: 2, kind: output, shape index: {}]
  %s3 = sld [smem:[#allocation0]]
  $region26: #{tpu_custom_call.1} parent=0
    _
  %s5 = ssub.s32 1, %s3
  %s6 = scalar_select 0, %s5, %s3
  $region1: #{tpu_custom_call.1} parent=0
    #allocation2 [shape = 'u8[8192]{0}', space=vmem, size = 0x2000, scoped, tag = 'input window, operand 0, single buffered']
    #allocation3 [shape = 's32[1]{0}', space=sflag, size = 0x4, scoped, tag = 'scoped memory for tpu_custom_call.1']
    #allocation4 [shape = 's32[1]{0}', space=sflag, size = 0x4, scoped, tag = 'scoped memory for tpu_custom_call.1']
    #allocation5 [shape = 'u8[8192]{0}', space=vmem, size = 0x2000, scoped, tag = 'input window, operand 1, single buffered']
    #allocation6 [shape = 's32[1]{0}', space=sflag, size = 0x4, scoped, tag = 'scoped memory for tpu_custom_call.1']
    #allocation7 [shape = 'u8[512]{0}', space=vmem, size = 0x400, scoped, tag = 'output window, operand 0, single buffered']
    %7 = vsyncpa [#allocation3], 0
    %8 = vsyncpa [#allocation6], 0
    %9 = vsyncpa [#allocation4], 0
    // Predicated region
    $region2: #{tpu_custom_call.1} parent=1 // pred_check
      _
    $region3: #{tpu_custom_call.1} parent=1 // pred_check_branch
      %11 = sbr.rel (0) target = $region5
    $region4: #{tpu_custom_call.1} parent=1 // pred_region
      %13 = vsyncadd [#allocation3], 0
      %s14 = sshll.u32 %s0, 4
      %s15 = int_to_ptr.hbm [resolvable:$true] %s14
      %s16 = sshll.u32 [#allocation2], 4
      %s17 = int_to_ptr.vmem [resolvable:$true] %s16
      %22 = dma.hbm_to_vmem [thread:$0]  %s15, 256, %s17, [#allocation3], 128, 128, 8
    $region5: #{tpu_custom_call.1} parent=1 // pred_fallthru
      _
    // Predicated region
    $region6: #{tpu_custom_call.1} parent=1 // pred_check
      _
    $region7: #{tpu_custom_call.1} parent=1 // pred_check_branch
      %24 = sbr.rel (0) target = $region9
    $region8: #{tpu_custom_call.1} parent=1 // pred_region
      %26 = vsyncadd [#allocation6], 0
      %s27 = sshll.u32 %s1, 4
      %s28 = int_to_ptr.hbm [resolvable:$true] %s27
      %s29 = sshll.u32 [#allocation5], 4
      %s30 = int_to_ptr.vmem [resolvable:$true] %s29
      %35 = dma.hbm_to_vmem [thread:$0]  %s28, 256, %s30, [#allocation6], 128, 128, 8
    $region9: #{tpu_custom_call.1} parent=1 // pred_fallthru
      _
    // Predicated region
    $region10: #{tpu_custom_call.1} parent=1 // pred_check
      _
    $region11: #{tpu_custom_call.1} parent=1 // pred_check_branch
      %37 = sbr.rel (0) target = $region13
    $region12: #{tpu_custom_call.1} parent=1 // pred_region
      %39 = dma.done [#allocation3], 256
    $region13: #{tpu_custom_call.1} parent=1 // pred_fallthru
      _
    // Predicated region
    $region14: #{tpu_custom_call.1} parent=1 // pred_check
      _
    $region15: #{tpu_custom_call.1} parent=1 // pred_check_branch
      %41 = sbr.rel (0) target = $region17
    $region16: #{tpu_custom_call.1} parent=1 // pred_region
      %43 = dma.done [#allocation6], 256
    $region17: #{tpu_custom_call.1} parent=1 // pred_fallthru
      _
    %v44 = vld [vmem:[#allocation2] sm:$0xff]
    %v45 = vld [vmem:[#allocation2 + $0x8] sm:$0xff]
    %v46 = vld [vmem:[#allocation5] sm:$0xff]
    %v47 = vld [vmem:[#allocation5 + $0x8] sm:$0xff]
    %v48 = vsub.f32 %v44, %v46
    %v49 = vsub.f32 %v45, %v47
    %v50 = vmul.f32 %v48, %v48
    %v51 = vmul.f32 %v49, %v49
    %v52 = vadd.f32 %v50, %v51
    %v53 = vrot.slane %v52, 4
    %v54 = vadd.f32 %v52, %v53
    %v55 = vrot.slane %v54, 2
    %v56 = vadd.f32 %v54, %v55
    %v57 = vrot.slane %v56, 1
    %v58 = vadd.f32 %v56, %v57
    %59 = vst [vmem:[#allocation7] sm:$0x1] %v58
    // Predicated region
    $region18: #{tpu_custom_call.1} parent=1 // pred_check
      _
    $region19: #{tpu_custom_call.1} parent=1 // pred_check_branch
      %61 = sbr.rel (0) target = $region21
    $region20: #{tpu_custom_call.1} parent=1 // pred_region
      %63 = vsyncadd [#allocation4], 0
      %s65 = sshll.u32 [#allocation7], 4
      %s66 = int_to_ptr.vmem [resolvable:$true] %s65
      %s67 = sshll.u32 %s2, 4
      %s68 = int_to_ptr.hbm [resolvable:$true] %s67
      %70 = dma.vmem_to_hbm [thread:$0]  %s66, 16, %s68, [#allocation4]
    $region21: #{tpu_custom_call.1} parent=1 // pred_fallthru
      _
    // Predicated region
    $region22: #{tpu_custom_call.1} parent=1 // pred_check
      _
    $region23: #{tpu_custom_call.1} parent=1 // pred_check_branch
      %72 = sbr.rel (0) target = $region25
    $region24: #{tpu_custom_call.1} parent=1 // pred_region
      %74 = dma.done [#allocation4], 16
    $region25: #{tpu_custom_call.1} parent=1 // pred_fallthru
      _
    %75 = vsyncpa [#allocation3], 1
    %76 = vsyncpa [#allocation6], 1
    %77 = vsyncpa [#allocation4], 1

</llo_original>
